<compile_context>
chip_gen: v7x
topology: tpu7x:2x2x1
jax: 0.10.0
libtpu: 0.0.40
codegen_flags: <defaults>
</compile_context>

<pallas_src>
import math

import jax
import jax.numpy as jnp
import numpy as np
from jax.experimental import pallas as pl
from jax.experimental.pallas import tpu as pltpu

# model_hyperparam['HypE']
IN_CHANNELS = 1
OUT_CHANNELS = 3
FILT_H = 1
FILT_W = 1
STRIDE = 2


def _cdiv(a, b):
    return -(-a // b)


def _round_up(x, m):
    return _cdiv(x, m) * m


def _vmem_capacity_bytes():
    """Per-core VMEM capacity; conservative 64 MiB (v7x) fallback."""
    try:
        cap = getattr(pltpu.get_tpu_info(), "vmem_capacity_bytes", None)
        if cap:
            return int(cap)
    except Exception:
        pass
    return 64 * 1024 * 1024


def _choose_tile_rows(B, A, K, D, vmem_cap):
    """Batch-tile rows: VMEM-budgeted, near-equal tiles, multiple of 8."""
    budget = int(0.6 * vmem_cap)
    # Streamed bytes per batch row (x2: pipeline double-buffering):
    #   E tile (bf16) + ms/bs (f32) + r (f32) + out (f32).
    per_row = 2 * (A * K * 2 + A * 2 * 4 + D * 4 + 4)
    # Grid-invariant weight (bf16, single-buffered) + headroom.
    fixed = A * K * D * 2 + (2 << 20)
    cap = (budget - fixed) // per_row
    ceiling = 512 if vmem_cap <= 64 * 1024 * 1024 else 1024   # v7x vs v5e/v6e
    cap = max(8, min(int(cap), ceiling)) // 8 * 8
    n_tiles = _cdiv(B, cap)
    if n_tiles == 1 and B > 8:
        n_tiles = 2        # let the "parallel" grid axis split across 2 TCs (v7x)
    return _round_up(_cdiv(B, n_tiles), 8)


def hype_kernel(e_ref, w_ref, msbs_ref, r_ref, o_ref):
    """One grid step = one batch tile; the small arity loop is unrolled.

    e_ref   : (A, TB, K)  bf16  strided entity features + ones (bias) column
    w_ref   : (A, K, D)   bf16  folded conv+fc weight, fc bias in row W_out
    msbs_ref: (A, TB, 2)  f32   lane 0 = ms, lane 1 = bs
    r_ref   : (TB, D)     f32   relation embedding
    o_ref   : (TB, 1)     f32
    """
    arity = w_ref.shape[0]
    acc = r_ref[...]                                    # fold r into the product
    for i in range(arity):                              # small arity: unrolled
        h = jnp.dot(e_ref[i], w_ref[i],
                    preferred_element_type=jnp.float32)           # (TB, D) f32
        mb = msbs_ref[i]                                           # (TB, 2) f32
        h = h * mb[:, 0:1] + mb[:, 1:2]                 # broadcast over D lanes
        acc = acc * h
    o_ref[...] = jnp.sum(acc, axis=1, keepdims=True)


def hype_forward(params, r, E, ms, bs):
    """Pallas HypE forward.  r:(B,D)  E:(B,A,D)  ms,bs:(B,A)  ->  (B,)"""
    B, A, D = E.shape
    C = OUT_CHANNELS
    if not (IN_CHANNELS == 1 and FILT_H == 1 and FILT_W == 1):
        raise NotImplementedError(
            "conv+fc folding assumes in_channels == filt_h == filt_w == 1")
    w_out = math.floor((D - FILT_W) / STRIDE + 1)
    assert params["fc_w"].shape == (D, C * w_out)
    assert params["fc2_w"].shape == (C, A)

    # --- fold grouped 1x1 stride conv + fc into one (W_out, D) weight per arity
    # k_a[c] = fc2_w[c, a] + fc2_b[c];  W_a[w, d] = sum_c k_a[c] * fc_w[d, c*W_out + w]
    kvec = params["fc2_w"].T + params["fc2_b"][None, :]             # (A, C)
    wt = params["fc_w"].T.reshape(C, w_out, D)                      # (C, W_out, D)
    w_small = jnp.einsum("ac,cwd->awd", kvec, wt)                   # (A, W_out, D)

    # Bias column: e gets a ones column at feature index W_out, weight gets fc_b there.
    K = w_out + 1
    K_pad = _round_up(K, 8)

    vmem_cap = _vmem_capacity_bytes()
    TB = _choose_tile_rows(B, A, K_pad, D, vmem_cap)
    B_pad = _round_up(B, TB)

    # --- operands ------------------------------------------------------------
    # E: stride-sample once, lay out (A, B_pad, K_pad): batch on sublanes,
    # features on lanes; padded rows are all-zero (ms/bs padding zeroes them out).
    e_s = jnp.transpose(E.astype(jnp.float32)[:, :, ::STRIDE][:, :, :w_out],
                        (1, 0, 2))                                  # (A, B, W_out)
    e_aug = jnp.concatenate([e_s, jnp.ones((A, B, 1), jnp.float32)], axis=2)
    e_aug = jnp.pad(e_aug, ((0, 0), (0, B_pad - B), (0, K_pad - K)))
    e_aug = e_aug.astype(jnp.bfloat16)                              # (A, B_pad, K_pad)

    w_aug = jnp.zeros((A, K_pad, D), jnp.float32)
    w_aug = w_aug.at[:, :w_out, :].set(w_small)
    w_aug = w_aug.at[:, w_out, :].set(params["fc_b"][None, :].astype(jnp.float32))
    w_aug = w_aug.astype(jnp.bfloat16)                              # (A, K_pad, D)

    msbs = jnp.stack([ms.T, bs.T], axis=-1).astype(jnp.float32)     # (A, B, 2)
    msbs = jnp.pad(msbs, ((0, 0), (0, B_pad - B), (0, 0)))
    r_p = jnp.pad(r.astype(jnp.float32), ((0, B_pad - B), (0, 0)))  # (B_pad, D)

    # --- pallas_call ---------------------------------------------------------
    grid = (B_pad // TB,)
    vmem_limit = int(min(0.8 * vmem_cap, 112 * 1024 * 1024))

    def call(weight_spec):
        return pl.pallas_call(
            hype_kernel,
            out_shape=jax.ShapeDtypeStruct((B_pad, 1), jnp.float32),
            grid=grid,
            in_specs=[
                pl.BlockSpec((A, TB, K_pad), lambda b: (0, b, 0)),   # E
                weight_spec,                                         # W (resident)
                pl.BlockSpec((A, TB, 2), lambda b: (0, b, 0)),       # ms/bs
                pl.BlockSpec((TB, D), lambda b: (b, 0)),             # r
            ],
            out_specs=pl.BlockSpec((TB, 1), lambda b: (b, 0)),
            compiler_params=pltpu.CompilerParams(
                dimension_semantics=("parallel",),
                vmem_limit_bytes=vmem_limit,
            ),
        )(e_aug, w_aug, msbs, r_p)

    try:
        # Grid-invariant weight: single-buffered (halves its VMEM reservation).
        out = call(pl.BlockSpec((A, K_pad, D), lambda b: (0, 0, 0),
                                pipeline_mode=pl.Buffered(1)))
    except Exception:
        # jax version without BlockSpec pipeline_mode support: default buffering.
        out = call(pl.BlockSpec((A, K_pad, D), lambda b: (0, 0, 0)))
    return out[:B, 0]


def hype_reference(params, r, E, ms, bs):
    """Pure-JAX f32 reference mirroring the PyTorch forward (conv not folded)."""
    B, A, D = E.shape
    C = OUT_CHANNELS
    w_out = math.floor((D - FILT_W) / STRIDE + 1)
    x = None
    for i in range(A):
        e = E[:, i, ::STRIDE][:, :w_out]                            # (B, W_out)
        k = params["fc2_w"][:, i] + params["fc2_b"]                 # (C,)
        feats = (k[None, :, None] * e[:, None, :]).reshape(B, C * w_out)
        h = feats @ params["fc_w"].T + params["fc_b"]
        h = h * ms[:, i:i + 1] + bs[:, i:i + 1]
        x = h if i == 0 else x * h
    return jnp.sum(x * r, axis=1)


def init_params(key, emb_dim, arity):
    """Deterministic synthetic parameters matching the module's shapes."""
    C = OUT_CHANNELS
    w_out = math.floor((emb_dim - FILT_W) / STRIDE + 1)
    fc_length = (1 - FILT_H + 1) * w_out * C
    fc1_length = IN_CHANNELS * C * FILT_H * FILT_W
    k1, k2, k3, k4 = jax.random.split(key, 4)
    return {
        # fc: Linear(fc_length, emb_dim)
        "fc_w": jax.random.normal(k1, (emb_dim, fc_length), jnp.float32)
        * (1.0 / math.sqrt(fc_length)),
        "fc_b": jax.random.normal(k2, (emb_dim,), jnp.float32) * 0.01,
        # fc2: Linear(arity, fc1_length)
        "fc2_w": jax.random.normal(k3, (fc1_length, arity), jnp.float32)
        * (1.0 / math.sqrt(arity)),
        "fc2_b": jax.random.normal(k4, (fc1_length,), jnp.float32) * 0.01,
    }


if __name__ == "__main__":
    B, ARITY, EMB_DIM = 2, 3, 32

    key = jax.random.PRNGKey(0)
    kp, kr, ke, km, kb = jax.random.split(key, 5)

    params = init_params(kp, EMB_DIM, ARITY)
    r = jax.random.normal(kr, (B, EMB_DIM), jnp.float32)
    E = jax.random.normal(ke, (B, ARITY, EMB_DIM), jnp.float32)
    ms = jax.random.uniform(km, (B, ARITY), jnp.float32)
    bs = jax.random.normal(kb, (B, ARITY), jnp.float32) * 0.1

    out = jax.block_until_ready(hype_forward(params, r, E, ms, bs))
    ref = hype_reference(params, r, E, ms, bs)
    # bf16 matmul operands (f32 accumulation / elementwise) -> loosened tolerance.
    np.testing.assert_allclose(np.asarray(out), np.asarray(ref),
                               rtol=3e-2, atol=3e-2)
    print("KERNEL_OK")
</pallas_src>

<mosaic_0001>
module attributes {stable_mosaic.version = 11 : i64} {
  func.func @hype_kernel(%arg0: i32, %arg1: memref<3x8x24xbf16, #tpu.memory_space<vmem>>, %arg2: memref<3x24x32xbf16, #tpu.memory_space<vmem>>, %arg3: memref<3x8x2xf32, #tpu.memory_space<vmem>>, %arg4: memref<8x32xf32, #tpu.memory_space<vmem>>, %arg5: memref<8x1xf32, #tpu.memory_space<vmem>>) attributes {dimension_semantics = [#tpu.dimension_semantics<parallel>], iteration_bounds = array<i64: 1>, scalar_prefetch = 0 : i64, scratch_operands = 0 : i64, tpu.core_type = #tpu.core_type<tc>, window_params = [{transform_indices = @transform_0, window_bounds = array<i64: 3, 8, 24>}, {pipeline_mode = #tpu.pipeline_mode<synchronous>, transform_indices = @transform_1, window_bounds = array<i64: 3, 24, 32>}, {transform_indices = @transform_2, window_bounds = array<i64: 3, 8, 2>}, {transform_indices = @transform_3, window_bounds = array<i64: 8, 32>}, {transform_indices = @transform_4, window_bounds = array<i64: 8, 1>}]} {
    %c0 = arith.constant 0 : index
    %c0_0 = arith.constant 0 : index
    %0 = vector.load %arg4[%c0, %c0_0] : memref<8x32xf32, #tpu.memory_space<vmem>>, vector<8x32xf32>
    %c0_1 = arith.constant 0 : index
    %c0_2 = arith.constant 0 : index
    %c0_3 = arith.constant 0 : index
    %1 = vector.load %arg1[%c0_1, %c0_2, %c0_3] : memref<3x8x24xbf16, #tpu.memory_space<vmem>>, vector<1x8x24xbf16>
    %2 = vector.shape_cast %1 : vector<1x8x24xbf16> to vector<8x24xbf16>
    %c0_4 = arith.constant 0 : index
    %c0_5 = arith.constant 0 : index
    %c0_6 = arith.constant 0 : index
    %3 = vector.load %arg2[%c0_4, %c0_5, %c0_6] : memref<3x24x32xbf16, #tpu.memory_space<vmem>>, vector<1x24x32xbf16>
    %4 = vector.shape_cast %3 : vector<1x24x32xbf16> to vector<24x32xbf16>
    %cst = arith.constant dense<0.000000e+00> : vector<8x32xf32>
    %5 = tpu.matmul %2, %4, %cst {dimension_numbers = #tpu.dot_dimension_numbers<[1], [0], [0], [1], [0, 0, 1, 1], [], []>} : vector<8x24xbf16>, vector<24x32xbf16>, vector<8x32xf32> -> vector<8x32xf32>
    %c0_7 = arith.constant 0 : index
    %c0_8 = arith.constant 0 : index
    %c0_9 = arith.constant 0 : index
    %6 = vector.load %arg3[%c0_7, %c0_8, %c0_9] : memref<3x8x2xf32, #tpu.memory_space<vmem>>, vector<1x8x2xf32>
    %7 = vector.shape_cast %6 : vector<1x8x2xf32> to vector<8x2xf32>
    %8 = vector.extract_strided_slice %7 {offsets = [0, 0], sizes = [8, 1], strides = [1, 1]} : vector<8x2xf32> to vector<8x1xf32>
    %9 = vector.broadcast %8 : vector<8x1xf32> to vector<8x32xf32>
    %10 = arith.mulf %5, %9 : vector<8x32xf32>
    %11 = vector.extract_strided_slice %7 {offsets = [0, 1], sizes = [8, 1], strides = [1, 1]} : vector<8x2xf32> to vector<8x1xf32>
    %12 = vector.broadcast %11 : vector<8x1xf32> to vector<8x32xf32>
    %13 = arith.addf %10, %12 : vector<8x32xf32>
    %14 = arith.mulf %0, %13 : vector<8x32xf32>
    %c1 = arith.constant 1 : index
    %c0_10 = arith.constant 0 : index
    %c0_11 = arith.constant 0 : index
    %15 = vector.load %arg1[%c1, %c0_10, %c0_11] : memref<3x8x24xbf16, #tpu.memory_space<vmem>>, vector<1x8x24xbf16>
    %16 = vector.shape_cast %15 : vector<1x8x24xbf16> to vector<8x24xbf16>
    %c1_12 = arith.constant 1 : index
    %c0_13 = arith.constant 0 : index
    %c0_14 = arith.constant 0 : index
    %17 = vector.load %arg2[%c1_12, %c0_13, %c0_14] : memref<3x24x32xbf16, #tpu.memory_space<vmem>>, vector<1x24x32xbf16>
    %18 = vector.shape_cast %17 : vector<1x24x32xbf16> to vector<24x32xbf16>
    %cst_15 = arith.constant dense<0.000000e+00> : vector<8x32xf32>
    %19 = tpu.matmul %16, %18, %cst_15 {dimension_numbers = #tpu.dot_dimension_numbers<[1], [0], [0], [1], [0, 0, 1, 1], [], []>} : vector<8x24xbf16>, vector<24x32xbf16>, vector<8x32xf32> -> vector<8x32xf32>
    %c1_16 = arith.constant 1 : index
    %c0_17 = arith.constant 0 : index
    %c0_18 = arith.constant 0 : index
    %20 = vector.load %arg3[%c1_16, %c0_17, %c0_18] : memref<3x8x2xf32, #tpu.memory_space<vmem>>, vector<1x8x2xf32>
    %21 = vector.shape_cast %20 : vector<1x8x2xf32> to vector<8x2xf32>
    %22 = vector.extract_strided_slice %21 {offsets = [0, 0], sizes = [8, 1], strides = [1, 1]} : vector<8x2xf32> to vector<8x1xf32>
    %23 = vector.broadcast %22 : vector<8x1xf32> to vector<8x32xf32>
    %24 = arith.mulf %19, %23 : vector<8x32xf32>
    %25 = vector.extract_strided_slice %21 {offsets = [0, 1], sizes = [8, 1], strides = [1, 1]} : vector<8x2xf32> to vector<8x1xf32>
    %26 = vector.broadcast %25 : vector<8x1xf32> to vector<8x32xf32>
    %27 = arith.addf %24, %26 : vector<8x32xf32>
    %28 = arith.mulf %14, %27 : vector<8x32xf32>
    %c2 = arith.constant 2 : index
    %c0_19 = arith.constant 0 : index
    %c0_20 = arith.constant 0 : index
    %29 = vector.load %arg1[%c2, %c0_19, %c0_20] : memref<3x8x24xbf16, #tpu.memory_space<vmem>>, vector<1x8x24xbf16>
    %30 = vector.shape_cast %29 : vector<1x8x24xbf16> to vector<8x24xbf16>
    %c2_21 = arith.constant 2 : index
    %c0_22 = arith.constant 0 : index
    %c0_23 = arith.constant 0 : index
    %31 = vector.load %arg2[%c2_21, %c0_22, %c0_23] : memref<3x24x32xbf16, #tpu.memory_space<vmem>>, vector<1x24x32xbf16>
    %32 = vector.shape_cast %31 : vector<1x24x32xbf16> to vector<24x32xbf16>
    %cst_24 = arith.constant dense<0.000000e+00> : vector<8x32xf32>
    %33 = tpu.matmul %30, %32, %cst_24 {dimension_numbers = #tpu.dot_dimension_numbers<[1], [0], [0], [1], [0, 0, 1, 1], [], []>} : vector<8x24xbf16>, vector<24x32xbf16>, vector<8x32xf32> -> vector<8x32xf32>
    %c2_25 = arith.constant 2 : index
    %c0_26 = arith.constant 0 : index
    %c0_27 = arith.constant 0 : index
    %34 = vector.load %arg3[%c2_25, %c0_26, %c0_27] : memref<3x8x2xf32, #tpu.memory_space<vmem>>, vector<1x8x2xf32>
    %35 = vector.shape_cast %34 : vector<1x8x2xf32> to vector<8x2xf32>
    %36 = vector.extract_strided_slice %35 {offsets = [0, 0], sizes = [8, 1], strides = [1, 1]} : vector<8x2xf32> to vector<8x1xf32>
    %37 = vector.broadcast %36 : vector<8x1xf32> to vector<8x32xf32>
    %38 = arith.mulf %33, %37 : vector<8x32xf32>
    %39 = vector.extract_strided_slice %35 {offsets = [0, 1], sizes = [8, 1], strides = [1, 1]} : vector<8x2xf32> to vector<8x1xf32>
    %40 = vector.broadcast %39 : vector<8x1xf32> to vector<8x32xf32>
    %41 = arith.addf %38, %40 : vector<8x32xf32>
    %42 = arith.mulf %28, %41 : vector<8x32xf32>
    %cst_28 = arith.constant dense<0.000000e+00> : vector<8xf32>
    %43 = vector.multi_reduction <add>, %42, %cst_28 [1] : vector<8x32xf32> to vector<8xf32>
    %44 = vector.shape_cast %43 : vector<8xf32> to vector<8x1xf32>
    %c0_29 = arith.constant 0 : index
    %c0_30 = arith.constant 0 : index
    %45 = vector.load %arg5[%c0_29, %c0_30] : memref<8x1xf32, #tpu.memory_space<vmem>>, vector<8x1xf32>
    tpu.vector_store %arg5[%c0_29, %c0_30], %44 {strides = array<i32>} : memref<8x1xf32, #tpu.memory_space<vmem>>, vector<8x1xf32>,
    return
  }
  func.func @transform_0(%arg0: i32) -> (i32, i32, i32) {
    %c0_i32 = arith.constant 0 : i32
    %c0_i32_0 = arith.constant 0 : i32
    %c0_i32_1 = arith.constant 0 : i32
    return %c0_i32, %arg0, %c0_i32_0 : i32, i32, i32
  }
  func.func @transform_1(%arg0: i32) -> (i32, i32, i32) {
    %c0_i32 = arith.constant 0 : i32
    %c0_i32_0 = arith.constant 0 : i32
    %c0_i32_1 = arith.constant 0 : i32
    %c0_i32_2 = arith.constant 0 : i32
    return %c0_i32, %c0_i32_0, %c0_i32_1 : i32, i32, i32
  }
  func.func @transform_2(%arg0: i32) -> (i32, i32, i32) {
    %c0_i32 = arith.constant 0 : i32
    %c0_i32_0 = arith.constant 0 : i32
    %c0_i32_1 = arith.constant 0 : i32
    return %c0_i32, %arg0, %c0_i32_0 : i32, i32, i32
  }
  func.func @transform_3(%arg0: i32) -> (i32, i32) {
    %c0_i32 = arith.constant 0 : i32
    %c0_i32_0 = arith.constant 0 : i32
    return %arg0, %c0_i32 : i32, i32
  }
  func.func @transform_4(%arg0: i32) -> (i32, i32) {
    %c0_i32 = arith.constant 0 : i32
    %c0_i32_0 = arith.constant 0 : i32
    return %arg0, %c0_i32 : i32, i32
  }
}

module attributes {stable_mosaic.version = 11 : i64} {
  func.func @hype_kernel(%arg0: i32, %arg1: memref<3x8x24xbf16, #tpu.memory_space<vmem>>, %arg2: memref<3x24x32xbf16, #tpu.memory_space<vmem>>, %arg3: memref<3x8x2xf32, #tpu.memory_space<vmem>>, %arg4: memref<8x32xf32, #tpu.memory_space<vmem>>, %arg5: memref<8x1xf32, #tpu.memory_space<vmem>>) attributes {dimension_semantics = [#tpu.dimension_semantics<parallel>], iteration_bounds = array<i64: 1>, scalar_prefetch = 0 : i64, scratch_operands = 0 : i64, tpu.core_type = #tpu.core_type<tc>, window_params = [{transform_indices = @transform_0, window_bounds = array<i64: 3, 8, 24>}, {pipeline_mode = #tpu.pipeline_mode<synchronous>, transform_indices = @transform_1, window_bounds = array<i64: 3, 24, 32>}, {transform_indices = @transform_2, window_bounds = array<i64: 3, 8, 2>}, {transform_indices = @transform_3, window_bounds = array<i64: 8, 32>}, {transform_indices = @transform_4, window_bounds = array<i64: 8, 1>}]} {
    %c0 = arith.constant 0 : index
    %c0_0 = arith.constant 0 : index
    %0 = vector.load %arg4[%c0, %c0_0] : memref<8x32xf32, #tpu.memory_space<vmem>>, vector<8x32xf32>
    %c0_1 = arith.constant 0 : index
    %c0_2 = arith.constant 0 : index
    %c0_3 = arith.constant 0 : index
    %1 = vector.load %arg1[%c0_1, %c0_2, %c0_3] : memref<3x8x24xbf16, #tpu.memory_space<vmem>>, vector<1x8x24xbf16>
    %2 = vector.shape_cast %1 : vector<1x8x24xbf16> to vector<8x24xbf16>
    %c0_4 = arith.constant 0 : index
    %c0_5 = arith.constant 0 : index
    %c0_6 = arith.constant 0 : index
    %3 = vector.load %arg2[%c0_4, %c0_5, %c0_6] : memref<3x24x32xbf16, #tpu.memory_space<vmem>>, vector<1x24x32xbf16>
    %4 = vector.shape_cast %3 : vector<1x24x32xbf16> to vector<24x32xbf16>
    %cst = arith.constant dense<0.000000e+00> : vector<8x32xf32>
    %5 = tpu.matmul %2, %4, %cst {dimension_numbers = #tpu.dot_dimension_numbers<[1], [0], [0], [1], [0, 0, 1, 1], [], []>} : vector<8x24xbf16>, vector<24x32xbf16>, vector<8x32xf32> -> vector<8x32xf32>
    %c0_7 = arith.constant 0 : index
    %c0_8 = arith.constant 0 : index
    %c0_9 = arith.constant 0 : index
    %6 = vector.load %arg3[%c0_7, %c0_8, %c0_9] : memref<3x8x2xf32, #tpu.memory_space<vmem>>, vector<1x8x2xf32>
    %7 = vector.shape_cast %6 : vector<1x8x2xf32> to vector<8x2xf32>
    %8 = vector.extract_strided_slice %7 {offsets = [0, 0], sizes = [8, 1], strides = [1, 1]} : vector<8x2xf32> to vector<8x1xf32>
    %9 = vector.broadcast %8 : vector<8x1xf32> to vector<8x32xf32>
    %10 = arith.mulf %5, %9 : vector<8x32xf32>
    %11 = vector.extract_strided_slice %7 {offsets = [0, 1], sizes = [8, 1], strides = [1, 1]} : vector<8x2xf32> to vector<8x1xf32>
    %12 = vector.broadcast %11 : vector<8x1xf32> to vector<8x32xf32>
    %13 = arith.addf %10, %12 : vector<8x32xf32>
    %14 = arith.mulf %0, %13 : vector<8x32xf32>
    %c1 = arith.constant 1 : index
    %c0_10 = arith.constant 0 : index
    %c0_11 = arith.constant 0 : index
    %15 = vector.load %arg1[%c1, %c0_10, %c0_11] : memref<3x8x24xbf16, #tpu.memory_space<vmem>>, vector<1x8x24xbf16>
    %16 = vector.shape_cast %15 : vector<1x8x24xbf16> to vector<8x24xbf16>
    %c1_12 = arith.constant 1 : index
    %c0_13 = arith.constant 0 : index
    %c0_14 = arith.constant 0 : index
    %17 = vector.load %arg2[%c1_12, %c0_13, %c0_14] : memref<3x24x32xbf16, #tpu.memory_space<vmem>>, vector<1x24x32xbf16>
    %18 = vector.shape_cast %17 : vector<1x24x32xbf16> to vector<24x32xbf16>
    %cst_15 = arith.constant dense<0.000000e+00> : vector<8x32xf32>
    %19 = tpu.matmul %16, %18, %cst_15 {dimension_numbers = #tpu.dot_dimension_numbers<[1], [0], [0], [1], [0, 0, 1, 1], [], []>} : vector<8x24xbf16>, vector<24x32xbf16>, vector<8x32xf32> -> vector<8x32xf32>
    %c1_16 = arith.constant 1 : index
    %c0_17 = arith.constant 0 : index
    %c0_18 = arith.constant 0 : index
    %20 = vector.load %arg3[%c1_16, %c0_17, %c0_18] : memref<3x8x2xf32, #tpu.memory_space<vmem>>, vector<1x8x2xf32>
    %21 = vector.shape_cast %20 : vector<1x8x2xf32> to vector<8x2xf32>
    %22 = vector.extract_strided_slice %21 {offsets = [0, 0], sizes = [8, 1], strides = [1, 1]} : vector<8x2xf32> to vector<8x1xf32>
    %23 = vector.broadcast %22 : vector<8x1xf32> to vector<8x32xf32>
    %24 = arith.mulf %19, %23 : vector<8x32xf32>
    %25 = vector.extract_strided_slice %21 {offsets = [0, 1], sizes = [8, 1], strides = [1, 1]} : vector<8x2xf32> to vector<8x1xf32>
    %26 = vector.broadcast %25 : vector<8x1xf32> to vector<8x32xf32>
    %27 = arith.addf %24, %26 : vector<8x32xf32>
    %28 = arith.mulf %14, %27 : vector<8x32xf32>
    %c2 = arith.constant 2 : index
    %c0_19 = arith.constant 0 : index
    %c0_20 = arith.constant 0 : index
    %29 = vector.load %arg1[%c2, %c0_19, %c0_20] : memref<3x8x24xbf16, #tpu.memory_space<vmem>>, vector<1x8x24xbf16>
    %30 = vector.shape_cast %29 : vector<1x8x24xbf16> to vector<8x24xbf16>
    %c2_21 = arith.constant 2 : index
    %c0_22 = arith.constant 0 : index
    %c0_23 = arith.constant 0 : index
    %31 = vector.load %arg2[%c2_21, %c0_22, %c0_23] : memref<3x24x32xbf16, #tpu.memory_space<vmem>>, vector<1x24x32xbf16>
    %32 = vector.shape_cast %31 : vector<1x24x32xbf16> to vector<24x32xbf16>
    %cst_24 = arith.constant dense<0.000000e+00> : vector<8x32xf32>
    %33 = tpu.matmul %30, %32, %cst_24 {dimension_numbers = #tpu.dot_dimension_numbers<[1], [0], [0], [1], [0, 0, 1, 1], [], []>} : vector<8x24xbf16>, vector<24x32xbf16>, vector<8x32xf32> -> vector<8x32xf32>
    %c2_25 = arith.constant 2 : index
    %c0_26 = arith.constant 0 : index
    %c0_27 = arith.constant 0 : index
    %34 = vector.load %arg3[%c2_25, %c0_26, %c0_27] : memref<3x8x2xf32, #tpu.memory_space<vmem>>, vector<1x8x2xf32>
    %35 = vector.shape_cast %34 : vector<1x8x2xf32> to vector<8x2xf32>
    %36 = vector.extract_strided_slice %35 {offsets = [0, 0], sizes = [8, 1], strides = [1, 1]} : vector<8x2xf32> to vector<8x1xf32>
    %37 = vector.broadcast %36 : vector<8x1xf32> to vector<8x32xf32>
    %38 = arith.mulf %33, %37 : vector<8x32xf32>
    %39 = vector.extract_strided_slice %35 {offsets = [0, 1], sizes = [8, 1], strides = [1, 1]} : vector<8x2xf32> to vector<8x1xf32>
    %40 = vector.broadcast %39 : vector<8x1xf32> to vector<8x32xf32>
    %41 = arith.addf %38, %40 : vector<8x32xf32>
    %42 = arith.mulf %28, %41 : vector<8x32xf32>
    %cst_28 = arith.constant dense<0.000000e+00> : vector<8xf32>
    %43 = vector.multi_reduction <add>, %42, %cst_28 [1] : vector<8x32xf32> to vector<8xf32>
    %44 = vector.shape_cast %43 : vector<8xf32> to vector<8x1xf32>
    %c0_29 = arith.constant 0 : index
    %c0_30 = arith.constant 0 : index
    %45 = vector.load %arg5[%c0_29, %c0_30] : memref<8x1xf32, #tpu.memory_space<vmem>>, vector<8x1xf32>
    tpu.vector_store %arg5[%c0_29, %c0_30], %44 {strides = array<i32>} : memref<8x1xf32, #tpu.memory_space<vmem>>, vector<8x1xf32>,
    return
  }
  func.func @transform_0(%arg0: i32) -> (i32, i32, i32) {
    %c0_i32 = arith.constant 0 : i32
    %c0_i32_0 = arith.constant 0 : i32
    %c0_i32_1 = arith.constant 0 : i32
    return %c0_i32, %arg0, %c0_i32_0 : i32, i32, i32
  }
  func.func @transform_1(%arg0: i32) -> (i32, i32, i32) {
    %c0_i32 = arith.constant 0 : i32
    %c0_i32_0 = arith.constant 0 : i32
    %c0_i32_1 = arith.constant 0 : i32
    %c0_i32_2 = arith.constant 0 : i32
    return %c0_i32, %c0_i32_0, %c0_i32_1 : i32, i32, i32
  }
  func.func @transform_2(%arg0: i32) -> (i32, i32, i32) {
    %c0_i32 = arith.constant 0 : i32
    %c0_i32_0 = arith.constant 0 : i32
    %c0_i32_1 = arith.constant 0 : i32
    return %c0_i32, %arg0, %c0_i32_0 : i32, i32, i32
  }
  func.func @transform_3(%arg0: i32) -> (i32, i32) {
    %c0_i32 = arith.constant 0 : i32
    %c0_i32_0 = arith.constant 0 : i32
    return %arg0, %c0_i32 : i32, i32
  }
  func.func @transform_4(%arg0: i32) -> (i32, i32) {
    %c0_i32 = arith.constant 0 : i32
    %c0_i32_0 = arith.constant 0 : i32
    return %arg0, %c0_i32 : i32, i32
  }
}

</mosaic_0001>

<llo_original>
// kernel: tpu_custom_call.1
$region0: #{tpu_custom_call.1}
  #allocation0 [shape = 'u32[]', space=smem, size = 0x4, offset = 0x4, fixed_abs, tag = 'smem constant byte address 0x4 - core index']
  #allocation1 [shape = 'u32[144,128]{1,0:T(1,128)}', space=vmem, size = 0x12000, scoped, tag = 'internal scratch']
  %s0 = inlined_call_operand.vmem [shape: bf16[3,8,24], index: 0, kind: input, shape index: {}]
  %s1 = inlined_call_operand.hbm [shape: bf16[3,24,32], index: 1, kind: input, shape index: {}]
  %s2 = inlined_call_operand.vmem [shape: f32[3,8,2], index: 2, kind: input, shape index: {}]
  %s3 = inlined_call_operand.vmem [shape: f32[8,32], index: 3, kind: input, shape index: {}]
  %s4 = inlined_call_operand.vmem [shape: f32[8,1], index: 4, kind: output, shape index: {}]
  %s5 = sld [smem:[#allocation0]]
  $region30: #{tpu_custom_call.1} parent=0
    _
  %s7 = ssub.s32 1, %s5
  %s8 = scalar_select 0, %s7, %s5
  $region1: #{tpu_custom_call.1} parent=0
    #allocation2 [shape = 'u8[18432]{0}', space=vmem, size = 0x4800, scoped, tag = 'input window, operand 1, single buffered']
    #allocation3 [shape = 's32[1]{0}', space=sflag, size = 0x4, scoped, tag = 'scoped memory for tpu_custom_call.1']
    %9 = vsyncpa [#allocation3], 0
    // Predicated region
    $region2: #{tpu_custom_call.1} parent=1 // pred_check
      _
    $region3: #{tpu_custom_call.1} parent=1 // pred_check_branch
      %11 = sbr.rel (0) target = $region5
    $region4: #{tpu_custom_call.1} parent=1 // pred_region
      _
    $region5: #{tpu_custom_call.1} parent=1 // pred_fallthru
      _
    // Predicated region
    $region6: #{tpu_custom_call.1} parent=1 // pred_check
      _
    $region7: #{tpu_custom_call.1} parent=1 // pred_check_branch
      %13 = sbr.rel (0) target = $region9
    $region8: #{tpu_custom_call.1} parent=1 // pred_region
      %s15 = ssub.s32 576, 576
      %16 = vsyncadd [#allocation3], %s15
      %s17 = sshll.u32 [#allocation2], 4
      %s18 = int_to_ptr.vmem [resolvable:$true] %s17
      %23 = dma.hbm_to_vmem [thread:$0]  %s1, 576, %s18, [#allocation3], 64, 64, 4
    $region9: #{tpu_custom_call.1} parent=1 // pred_fallthru
      _
    // Predicated region
    $region10: #{tpu_custom_call.1} parent=1 // pred_check
      _
    $region11: #{tpu_custom_call.1} parent=1 // pred_check_branch
      %25 = sbr.rel (0) target = $region13
    $region12: #{tpu_custom_call.1} parent=1 // pred_region
      _
    $region13: #{tpu_custom_call.1} parent=1 // pred_fallthru
      _
    // Predicated region
    $region14: #{tpu_custom_call.1} parent=1 // pred_check
      _
    $region15: #{tpu_custom_call.1} parent=1 // pred_check_branch
      %27 = sbr.rel (0) target = $region17
    $region16: #{tpu_custom_call.1} parent=1 // pred_region
      _
    $region17: #{tpu_custom_call.1} parent=1 // pred_fallthru
      _
    // Predicated region
    $region18: #{tpu_custom_call.1} parent=1 // pred_check
      _
    $region19: #{tpu_custom_call.1} parent=1 // pred_check_branch
      %29 = sbr.rel (0) target = $region21
    $region20: #{tpu_custom_call.1} parent=1 // pred_region
      %30 = dma.done [#allocation3], 576
    $region21: #{tpu_custom_call.1} parent=1 // pred_fallthru
      _
    %v32 = vld [vmem:[%s3] sm:$0xff]
    %v33 = vld [vmem:[%s0] sm:$0xf]
    %v34 = vld [vmem:[#allocation2] sm:$0xf]
    %v35 = vld [vmem:[#allocation2 + $0x4] sm:$0xf]
    %v36 = vld [vmem:[#allocation2 + $0x8] sm:$0xf]
    %v40 = vunpack.c.l.b16 %v34
    %v41 = vunpack.c.l.b16 %v35
    %v42 = vunpack.c.l.b16 %v36
    %v43 = vpack.c.b16 %v41, %v40
    %v44 = vpack.c.b16 %v42, %v42
    %vm46 = vcmask 195584
    %v48 = vsel %vm46, %v33, 0
    %vm50 = vcmask 1043456
    %v52 = vsel %vm50, %v44, 0
    %54 = vmatprep.subr.bf16.mxu0 0
    %55 = vmatpush1.bf16.msra.mxu0 %v43
    %56 = vmatprep.subr.bf16.mxu0 0
    %57 = vmatpush1.bf16.msra.mxu0 %v52
    %58 = vmatprep.subr.bf16.mxu0 0
    %59 = vmatpush1.bf16.msra.mxu0 0
    %60 = vmatprep.subr.bf16.mxu0 0
    %61 = vmatpush1.bf16.msra.mxu0 0
    %62 = vmatprep.subr.bf16.mxu0 0
    %63 = vmatpush1.bf16.msra.mxu0 0
    %64 = vmatprep.subr.bf16.mxu0 0
    %65 = vmatpush1.bf16.msra.mxu0 0
    %66 = vmatprep.subr.bf16.mxu0 0
    %67 = vmatpush1.bf16.msra.mxu0 0
    %68 = vmatprep.subr.bf16.mxu0 0
    %69 = vmatpush1.bf16.msra.mxu0 0
    %70 = vmatprep.subr.bf16.mxu0 0
    %71 = vmatpush1.bf16.msra.mxu0 0
    %72 = vmatprep.subr.bf16.mxu0 0
    %73 = vmatpush1.bf16.msra.mxu0 0
    %74 = vmatprep.subr.bf16.mxu0 0
    %75 = vmatpush1.bf16.msra.mxu0 0
    %76 = vmatprep.subr.bf16.mxu0 0
    %77 = vmatpush1.bf16.msra.mxu0 0
    %78 = vmatprep.subr.bf16.mxu0 0
    %79 = vmatpush1.bf16.msra.mxu0 0
    %80 = vmatprep.subr.bf16.mxu0 0
    %81 = vmatpush1.bf16.msra.mxu0 0
    %82 = vmatprep.subr.bf16.mxu0 0
    %83 = vmatpush1.bf16.msra.mxu0 0
    %84 = vmatprep.subr.bf16.mxu0 0
    %85 = vmatpush1.bf16.msra.mxu0 0
    %86 = vmatprep.mubr.bf16.mxu0 0
    %87 = vmatmul.mubr.bf16.gmra.mrb[0].mxu0 %v48
    %v88 = vpop.f32.mrb[0].mxu0
    %v89 = vadd.f32 0.0, %v88
    %v90 = vpop.f32.mrb[0].mxu0
    %v91 = vpop.f32.mrb[0].mxu0
    %v92 = vpop.f32.mrb[0].mxu0
    %93 = vdwg.mxu0
    %v94 = vld [vmem:[%s2] sm:$0xff]
    %96 = vset.pattern.permute.xlu0 0
    %97 = vperm.xlu0 %96, %v94
    %v98 = vpop.permute.xlu0 %97
    %v100 = vmul.f32 %v89, %v98
    %101 = vset.pattern.permute.xlu0 1
    %102 = vperm.xlu0 %101, %v94
    %v103 = vpop.permute.xlu0 %102
    %v105 = vadd.f32 %v100, %v103
    %v106 = vmul.f32 %v32, %v105
    %s107 = scalar_lea.vmem %s0, 4
    %v108 = vld [vmem:[%s107] sm:$0xf]
    %s109 = scalar_lea.vmem [#allocation2], 12
    %v110 = vld [vmem:[%s109] sm:$0xf]
    %v111 = vld [vmem:[%s109 + $0x4] sm:$0xf]
    %v112 = vld [vmem:[%s109 + $0x8] sm:$0xf]
    %v116 = vunpack.c.l.b16 %v110
    %v117 = vunpack.c.l.b16 %v111
    %v118 = vunpack.c.l.b16 %v112
    %v119 = vpack.c.b16 %v117, %v116
    %v120 = vpack.c.b16 %v118, %v118
    %v123 = vsel %vm46, %v108, 0
    %v126 = vsel %vm50, %v120, 0
    %128 = vmatprep.subr.bf16.mxu0 0
    %129 = vmatpush1.bf16.msra.mxu0 %v119
    %130 = vmatprep.subr.bf16.mxu0 0
    %131 = vmatpush1.bf16.msra.mxu0 %v126
    %132 = vmatprep.subr.bf16.mxu0 0
    %133 = vmatpush1.bf16.msra.mxu0 0
    %134 = vmatprep.subr.bf16.mxu0 0
    %135 = vmatpush1.bf16.msra.mxu0 0
    %136 = vmatprep.subr.bf16.mxu0 0
    %137 = vmatpush1.bf16.msra.mxu0 0
    %138 = vmatprep.subr.bf16.mxu0 0
    %139 = vmatpush1.bf16.msra.mxu0 0
    %140 = vmatprep.subr.bf16.mxu0 0
    %141 = vmatpush1.bf16.msra.mxu0 0
    %142 = vmatprep.subr.bf16.mxu0 0
    %143 = vmatpush1.bf16.msra.mxu0 0
    %144 = vmatprep.subr.bf16.mxu0 0
    %145 = vmatpush1.bf16.msra.mxu0 0
    %146 = vmatprep.subr.bf16.mxu0 0
    %147 = vmatpush1.bf16.msra.mxu0 0
    %148 = vmatprep.subr.bf16.mxu0 0
    %149 = vmatpush1.bf16.msra.mxu0 0
    %150 = vmatprep.subr.bf16.mxu0 0
    %151 = vmatpush1.bf16.msra.mxu0 0
    %152 = vmatprep.subr.bf16.mxu0 0
    %153 = vmatpush1.bf16.msra.mxu0 0
    %154 = vmatprep.subr.bf16.mxu0 0
    %155 = vmatpush1.bf16.msra.mxu0 0
    %156 = vmatprep.subr.bf16.mxu0 0
    %157 = vmatpush1.bf16.msra.mxu0 0
    %158 = vmatprep.subr.bf16.mxu0 0
    %159 = vmatpush1.bf16.msra.mxu0 0
    %160 = vmatprep.mubr.bf16.mxu0 0
    %161 = vmatmul.mubr.bf16.gmra.mrb[0].mxu0 %v123
    %v162 = vpop.f32.mrb[0].mxu0
    %v163 = vadd.f32 0.0, %v162
    %v164 = vpop.f32.mrb[0].mxu0
    %v165 = vpop.f32.mrb[0].mxu0
    %v166 = vpop.f32.mrb[0].mxu0
    %167 = vdwg.mxu0
    %s168 = scalar_lea.vmem %s2, 8
    %v169 = vld [vmem:[%s168] sm:$0xff]
    %171 = vset.pattern.permute.xlu0 0
    %172 = vperm.xlu0 %171, %v169
    %v173 = vpop.permute.xlu0 %172
    %v175 = vmul.f32 %v163, %v173
    %176 = vset.pattern.permute.xlu0 1
    %177 = vperm.xlu0 %176, %v169
    %v178 = vpop.permute.xlu0 %177
    %v180 = vadd.f32 %v175, %v178
    %v181 = vmul.f32 %v106, %v180
    %s182 = scalar_lea.vmem %s0, 8
    %v183 = vld [vmem:[%s182] sm:$0xf]
    %s184 = scalar_lea.vmem [#allocation2], 24
    %v185 = vld [vmem:[%s184] sm:$0xf]
    %v186 = vld [vmem:[%s184 + $0x4] sm:$0xf]
    %v187 = vld [vmem:[%s184 + $0x8] sm:$0xf]
    %v191 = vunpack.c.l.b16 %v185
    %v192 = vunpack.c.l.b16 %v186
    %v193 = vunpack.c.l.b16 %v187
    %v194 = vpack.c.b16 %v192, %v191
    %v195 = vpack.c.b16 %v193, %v193
    %v198 = vsel %vm46, %v183, 0
    %v201 = vsel %vm50, %v195, 0
    %203 = vmatprep.subr.bf16.mxu0 0
    %204 = vmatpush1.bf16.msra.mxu0 %v194
    %205 = vmatprep.subr.bf16.mxu0 0
    %206 = vmatpush1.bf16.msra.mxu0 %v201
    %207 = vmatprep.subr.bf16.mxu0 0
    %208 = vmatpush1.bf16.msra.mxu0 0
    %209 = vmatprep.subr.bf16.mxu0 0
    %210 = vmatpush1.bf16.msra.mxu0 0
    %211 = vmatprep.subr.bf16.mxu0 0
    %212 = vmatpush1.bf16.msra.mxu0 0
    %213 = vmatprep.subr.bf16.mxu0 0
    %214 = vmatpush1.bf16.msra.mxu0 0
    %215 = vmatprep.subr.bf16.mxu0 0
    %216 = vmatpush1.bf16.msra.mxu0 0
    %217 = vmatprep.subr.bf16.mxu0 0
    %218 = vmatpush1.bf16.msra.mxu0 0
    %219 = vmatprep.subr.bf16.mxu0 0
    %220 = vmatpush1.bf16.msra.mxu0 0
    %221 = vmatprep.subr.bf16.mxu0 0
    %222 = vmatpush1.bf16.msra.mxu0 0
    %223 = vmatprep.subr.bf16.mxu0 0
    %224 = vmatpush1.bf16.msra.mxu0 0
    %225 = vmatprep.subr.bf16.mxu0 0
    %226 = vmatpush1.bf16.msra.mxu0 0
    %227 = vmatprep.subr.bf16.mxu0 0
    %228 = vmatpush1.bf16.msra.mxu0 0
    %229 = vmatprep.subr.bf16.mxu0 0
    %230 = vmatpush1.bf16.msra.mxu0 0
    %231 = vmatprep.subr.bf16.mxu0 0
    %232 = vmatpush1.bf16.msra.mxu0 0
    %233 = vmatprep.subr.bf16.mxu0 0
    %234 = vmatpush1.bf16.msra.mxu0 0
    %235 = vmatprep.mubr.bf16.mxu0 0
    %236 = vmatmul.mubr.bf16.gmra.mrb[0].mxu0 %v198
    %v237 = vpop.f32.mrb[0].mxu0
    %v238 = vadd.f32 0.0, %v237
    %v239 = vpop.f32.mrb[0].mxu0
    %v240 = vpop.f32.mrb[0].mxu0
    %v241 = vpop.f32.mrb[0].mxu0
    %242 = vdwg.mxu0
    %s243 = scalar_lea.vmem %s2, 16
    %v244 = vld [vmem:[%s243] sm:$0xff]
    %246 = vset.pattern.permute.xlu0 0
    %247 = vperm.xlu0 %246, %v244
    %v248 = vpop.permute.xlu0 %247
    %v250 = vmul.f32 %v238, %v248
    %251 = vset.pattern.permute.xlu0 1
    %252 = vperm.xlu0 %251, %v244
    %v253 = vpop.permute.xlu0 %252
    %v255 = vadd.f32 %v250, %v253
    %v256 = vmul.f32 %v181, %v255
    %vm257 = vcmask 261120
    %v258 = vsel %vm257, %v256, 0.0
    %259 = vadd.xlane.f32.xlu0 %v258
    %v260 = vpop.xlane.xlu0 %259
    %vm261 = vcmask 7168
    %262 = vst.msk [vmem:[%s4] sm:$0xff] %vm261, %v260
    // Predicated region
    $region22: #{tpu_custom_call.1} parent=1 // pred_check
      _
    $region23: #{tpu_custom_call.1} parent=1 // pred_check_branch
      %264 = sbr.rel (0) target = $region25
    $region24: #{tpu_custom_call.1} parent=1 // pred_region
      _
    $region25: #{tpu_custom_call.1} parent=1 // pred_fallthru
      _
    // Predicated region
    $region26: #{tpu_custom_call.1} parent=1 // pred_check
      _
    $region27: #{tpu_custom_call.1} parent=1 // pred_check_branch
      %266 = sbr.rel (0) target = $region29
    $region28: #{tpu_custom_call.1} parent=1 // pred_region
      _
    $region29: #{tpu_custom_call.1} parent=1 // pred_fallthru
      _
    %267 = vsyncpa [#allocation3], 1

// kernel: tpu_custom_call.1
$region0: #{tpu_custom_call.1}
  #allocation0 [shape = 'u32[]', space=smem, size = 0x4, offset = 0x4, fixed_abs, tag = 'smem constant byte address 0x4 - core index']
  #allocation1 [shape = 'u32[144,128]{1,0:T(1,128)}', space=vmem, size = 0x12000, scoped, tag = 'internal scratch']
  %s0 = inlined_call_operand.vmem [shape: bf16[3,8,24], index: 0, kind: input, shape index: {}]
  %s1 = inlined_call_operand.hbm [shape: bf16[3,24,32], index: 1, kind: input, shape index: {}]
  %s2 = inlined_call_operand.vmem [shape: f32[3,8,2], index: 2, kind: input, shape index: {}]
  %s3 = inlined_call_operand.vmem [shape: f32[8,32], index: 3, kind: input, shape index: {}]
  %s4 = inlined_call_operand.vmem [shape: f32[8,1], index: 4, kind: output, shape index: {}]
  %s5 = sld [smem:[#allocation0]]
  $region30: #{tpu_custom_call.1} parent=0
    _
  %s7 = ssub.s32 1, %s5
  %s8 = scalar_select 0, %s7, %s5
  $region1: #{tpu_custom_call.1} parent=0
    #allocation2 [shape = 'u8[18432]{0}', space=vmem, size = 0x4800, scoped, tag = 'input window, operand 1, single buffered']
    #allocation3 [shape = 's32[1]{0}', space=sflag, size = 0x4, scoped, tag = 'scoped memory for tpu_custom_call.1']
    %9 = vsyncpa [#allocation3], 0
    // Predicated region
    $region2: #{tpu_custom_call.1} parent=1 // pred_check
      _
    $region3: #{tpu_custom_call.1} parent=1 // pred_check_branch
      %11 = sbr.rel (0) target = $region5
    $region4: #{tpu_custom_call.1} parent=1 // pred_region
      _
    $region5: #{tpu_custom_call.1} parent=1 // pred_fallthru
      _
    // Predicated region
    $region6: #{tpu_custom_call.1} parent=1 // pred_check
      _
    $region7: #{tpu_custom_call.1} parent=1 // pred_check_branch
      %13 = sbr.rel (0) target = $region9
    $region8: #{tpu_custom_call.1} parent=1 // pred_region
      %s15 = ssub.s32 576, 576
      %16 = vsyncadd [#allocation3], %s15
      %s17 = sshll.u32 [#allocation2], 4
      %s18 = int_to_ptr.vmem [resolvable:$true] %s17
      %23 = dma.hbm_to_vmem [thread:$0]  %s1, 576, %s18, [#allocation3], 64, 64, 4
    $region9: #{tpu_custom_call.1} parent=1 // pred_fallthru
      _
    // Predicated region
    $region10: #{tpu_custom_call.1} parent=1 // pred_check
      _
    $region11: #{tpu_custom_call.1} parent=1 // pred_check_branch
      %25 = sbr.rel (0) target = $region13
    $region12: #{tpu_custom_call.1} parent=1 // pred_region
      _
    $region13: #{tpu_custom_call.1} parent=1 // pred_fallthru
      _
    // Predicated region
    $region14: #{tpu_custom_call.1} parent=1 // pred_check
      _
    $region15: #{tpu_custom_call.1} parent=1 // pred_check_branch
      %27 = sbr.rel (0) target = $region17
    $region16: #{tpu_custom_call.1} parent=1 // pred_region
      _
    $region17: #{tpu_custom_call.1} parent=1 // pred_fallthru
      _
    // Predicated region
    $region18: #{tpu_custom_call.1} parent=1 // pred_check
      _
    $region19: #{tpu_custom_call.1} parent=1 // pred_check_branch
      %29 = sbr.rel (0) target = $region21
    $region20: #{tpu_custom_call.1} parent=1 // pred_region
      %30 = dma.done [#allocation3], 576
    $region21: #{tpu_custom_call.1} parent=1 // pred_fallthru
      _
    %v32 = vld [vmem:[%s3] sm:$0xff]
    %v33 = vld [vmem:[%s0] sm:$0xf]
    %v34 = vld [vmem:[#allocation2] sm:$0xf]
    %v35 = vld [vmem:[#allocation2 + $0x4] sm:$0xf]
    %v36 = vld [vmem:[#allocation2 + $0x8] sm:$0xf]
    %v40 = vunpack.c.l.b16 %v34
    %v41 = vunpack.c.l.b16 %v35
    %v42 = vunpack.c.l.b16 %v36
    %v43 = vpack.c.b16 %v41, %v40
    %v44 = vpack.c.b16 %v42, %v42
    %vm46 = vcmask 195584
    %v48 = vsel %vm46, %v33, 0
    %vm50 = vcmask 1043456
    %v52 = vsel %vm50, %v44, 0
    %54 = vmatprep.subr.bf16.mxu0 0
    %55 = vmatpush1.bf16.msra.mxu0 %v43
    %56 = vmatprep.subr.bf16.mxu0 0
    %57 = vmatpush1.bf16.msra.mxu0 %v52
    %58 = vmatprep.subr.bf16.mxu0 0
    %59 = vmatpush1.bf16.msra.mxu0 0
    %60 = vmatprep.subr.bf16.mxu0 0
    %61 = vmatpush1.bf16.msra.mxu0 0
    %62 = vmatprep.subr.bf16.mxu0 0
    %63 = vmatpush1.bf16.msra.mxu0 0
    %64 = vmatprep.subr.bf16.mxu0 0
    %65 = vmatpush1.bf16.msra.mxu0 0
    %66 = vmatprep.subr.bf16.mxu0 0
    %67 = vmatpush1.bf16.msra.mxu0 0
    %68 = vmatprep.subr.bf16.mxu0 0
    %69 = vmatpush1.bf16.msra.mxu0 0
    %70 = vmatprep.subr.bf16.mxu0 0
    %71 = vmatpush1.bf16.msra.mxu0 0
    %72 = vmatprep.subr.bf16.mxu0 0
    %73 = vmatpush1.bf16.msra.mxu0 0
    %74 = vmatprep.subr.bf16.mxu0 0
    %75 = vmatpush1.bf16.msra.mxu0 0
    %76 = vmatprep.subr.bf16.mxu0 0
    %77 = vmatpush1.bf16.msra.mxu0 0
    %78 = vmatprep.subr.bf16.mxu0 0
    %79 = vmatpush1.bf16.msra.mxu0 0
    %80 = vmatprep.subr.bf16.mxu0 0
    %81 = vmatpush1.bf16.msra.mxu0 0
    %82 = vmatprep.subr.bf16.mxu0 0
    %83 = vmatpush1.bf16.msra.mxu0 0
    %84 = vmatprep.subr.bf16.mxu0 0
    %85 = vmatpush1.bf16.msra.mxu0 0
    %86 = vmatprep.mubr.bf16.mxu0 0
    %87 = vmatmul.mubr.bf16.gmra.mrb[0].mxu0 %v48
    %v88 = vpop.f32.mrb[0].mxu0
    %v89 = vadd.f32 0.0, %v88
    %v90 = vpop.f32.mrb[0].mxu0
    %v91 = vpop.f32.mrb[0].mxu0
    %v92 = vpop.f32.mrb[0].mxu0
    %93 = vdwg.mxu0
    %v94 = vld [vmem:[%s2] sm:$0xff]
    %96 = vset.pattern.permute.xlu0 0
    %97 = vperm.xlu0 %96, %v94
    %v98 = vpop.permute.xlu0 %97
    %v100 = vmul.f32 %v89, %v98
    %101 = vset.pattern.permute.xlu0 1
    %102 = vperm.xlu0 %101, %v94
    %v103 = vpop.permute.xlu0 %102
    %v105 = vadd.f32 %v100, %v103
    %v106 = vmul.f32 %v32, %v105
    %s107 = scalar_lea.vmem %s0, 4
    %v108 = vld [vmem:[%s107] sm:$0xf]
    %s109 = scalar_lea.vmem [#allocation2], 12
    %v110 = vld [vmem:[%s109] sm:$0xf]
    %v111 = vld [vmem:[%s109 + $0x4] sm:$0xf]
    %v112 = vld [vmem:[%s109 + $0x8] sm:$0xf]
    %v116 = vunpack.c.l.b16 %v110
    %v117 = vunpack.c.l.b16 %v111
    %v118 = vunpack.c.l.b16 %v112
    %v119 = vpack.c.b16 %v117, %v116
    %v120 = vpack.c.b16 %v118, %v118
    %v123 = vsel %vm46, %v108, 0
    %v126 = vsel %vm50, %v120, 0
    %128 = vmatprep.subr.bf16.mxu0 0
    %129 = vmatpush1.bf16.msra.mxu0 %v119
    %130 = vmatprep.subr.bf16.mxu0 0
    %131 = vmatpush1.bf16.msra.mxu0 %v126
    %132 = vmatprep.subr.bf16.mxu0 0
    %133 = vmatpush1.bf16.msra.mxu0 0
    %134 = vmatprep.subr.bf16.mxu0 0
    %135 = vmatpush1.bf16.msra.mxu0 0
    %136 = vmatprep.subr.bf16.mxu0 0
    %137 = vmatpush1.bf16.msra.mxu0 0
    %138 = vmatprep.subr.bf16.mxu0 0
    %139 = vmatpush1.bf16.msra.mxu0 0
    %140 = vmatprep.subr.bf16.mxu0 0
    %141 = vmatpush1.bf16.msra.mxu0 0
    %142 = vmatprep.subr.bf16.mxu0 0
    %143 = vmatpush1.bf16.msra.mxu0 0
    %144 = vmatprep.subr.bf16.mxu0 0
    %145 = vmatpush1.bf16.msra.mxu0 0
    %146 = vmatprep.subr.bf16.mxu0 0
    %147 = vmatpush1.bf16.msra.mxu0 0
    %148 = vmatprep.subr.bf16.mxu0 0
    %149 = vmatpush1.bf16.msra.mxu0 0
    %150 = vmatprep.subr.bf16.mxu0 0
    %151 = vmatpush1.bf16.msra.mxu0 0
    %152 = vmatprep.subr.bf16.mxu0 0
    %153 = vmatpush1.bf16.msra.mxu0 0
    %154 = vmatprep.subr.bf16.mxu0 0
    %155 = vmatpush1.bf16.msra.mxu0 0
    %156 = vmatprep.subr.bf16.mxu0 0
    %157 = vmatpush1.bf16.msra.mxu0 0
    %158 = vmatprep.subr.bf16.mxu0 0
    %159 = vmatpush1.bf16.msra.mxu0 0
    %160 = vmatprep.mubr.bf16.mxu0 0
    %161 = vmatmul.mubr.bf16.gmra.mrb[0].mxu0 %v123
    %v162 = vpop.f32.mrb[0].mxu0
    %v163 = vadd.f32 0.0, %v162
    %v164 = vpop.f32.mrb[0].mxu0
    %v165 = vpop.f32.mrb[0].mxu0
    %v166 = vpop.f32.mrb[0].mxu0
    %167 = vdwg.mxu0
    %s168 = scalar_lea.vmem %s2, 8
    %v169 = vld [vmem:[%s168] sm:$0xff]
    %171 = vset.pattern.permute.xlu0 0
    %172 = vperm.xlu0 %171, %v169
    %v173 = vpop.permute.xlu0 %172
    %v175 = vmul.f32 %v163, %v173
    %176 = vset.pattern.permute.xlu0 1
    %177 = vperm.xlu0 %176, %v169
    %v178 = vpop.permute.xlu0 %177
    %v180 = vadd.f32 %v175, %v178
    %v181 = vmul.f32 %v106, %v180
    %s182 = scalar_lea.vmem %s0, 8
    %v183 = vld [vmem:[%s182] sm:$0xf]
    %s184 = scalar_lea.vmem [#allocation2], 24
    %v185 = vld [vmem:[%s184] sm:$0xf]
    %v186 = vld [vmem:[%s184 + $0x4] sm:$0xf]
    %v187 = vld [vmem:[%s184 + $0x8] sm:$0xf]
    %v191 = vunpack.c.l.b16 %v185
    %v192 = vunpack.c.l.b16 %v186
    %v193 = vunpack.c.l.b16 %v187
    %v194 = vpack.c.b16 %v192, %v191
    %v195 = vpack.c.b16 %v193, %v193
    %v198 = vsel %vm46, %v183, 0
    %v201 = vsel %vm50, %v195, 0
    %203 = vmatprep.subr.bf16.mxu0 0
    %204 = vmatpush1.bf16.msra.mxu0 %v194
    %205 = vmatprep.subr.bf16.mxu0 0
    %206 = vmatpush1.bf16.msra.mxu0 %v201
    %207 = vmatprep.subr.bf16.mxu0 0
    %208 = vmatpush1.bf16.msra.mxu0 0
    %209 = vmatprep.subr.bf16.mxu0 0
    %210 = vmatpush1.bf16.msra.mxu0 0
    %211 = vmatprep.subr.bf16.mxu0 0
    %212 = vmatpush1.bf16.msra.mxu0 0
    %213 = vmatprep.subr.bf16.mxu0 0
    %214 = vmatpush1.bf16.msra.mxu0 0
    %215 = vmatprep.subr.bf16.mxu0 0
    %216 = vmatpush1.bf16.msra.mxu0 0
    %217 = vmatprep.subr.bf16.mxu0 0
    %218 = vmatpush1.bf16.msra.mxu0 0
    %219 = vmatprep.subr.bf16.mxu0 0
    %220 = vmatpush1.bf16.msra.mxu0 0
    %221 = vmatprep.subr.bf16.mxu0 0
    %222 = vmatpush1.bf16.msra.mxu0 0
    %223 = vmatprep.subr.bf16.mxu0 0
    %224 = vmatpush1.bf16.msra.mxu0 0
    %225 = vmatprep.subr.bf16.mxu0 0
    %226 = vmatpush1.bf16.msra.mxu0 0
    %227 = vmatprep.subr.bf16.mxu0 0
    %228 = vmatpush1.bf16.msra.mxu0 0
    %229 = vmatprep.subr.bf16.mxu0 0
    %230 = vmatpush1.bf16.msra.mxu0 0
    %231 = vmatprep.subr.bf16.mxu0 0
    %232 = vmatpush1.bf16.msra.mxu0 0
    %233 = vmatprep.subr.bf16.mxu0 0
    %234 = vmatpush1.bf16.msra.mxu0 0
    %235 = vmatprep.mubr.bf16.mxu0 0
    %236 = vmatmul.mubr.bf16.gmra.mrb[0].mxu0 %v198
    %v237 = vpop.f32.mrb[0].mxu0
    %v238 = vadd.f32 0.0, %v237
    %v239 = vpop.f32.mrb[0].mxu0
    %v240 = vpop.f32.mrb[0].mxu0
    %v241 = vpop.f32.mrb[0].mxu0
    %242 = vdwg.mxu0
    %s243 = scalar_lea.vmem %s2, 16
    %v244 = vld [vmem:[%s243] sm:$0xff]
    %246 = vset.pattern.permute.xlu0 0
    %247 = vperm.xlu0 %246, %v244
    %v248 = vpop.permute.xlu0 %247
    %v250 = vmul.f32 %v238, %v248
    %251 = vset.pattern.permute.xlu0 1
    %252 = vperm.xlu0 %251, %v244
    %v253 = vpop.permute.xlu0 %252
    %v255 = vadd.f32 %v250, %v253
    %v256 = vmul.f32 %v181, %v255
    %vm257 = vcmask 261120
    %v258 = vsel %vm257, %v256, 0.0
    %259 = vadd.xlane.f32.xlu0 %v258
    %v260 = vpop.xlane.xlu0 %259
    %vm261 = vcmask 7168
    %262 = vst.msk [vmem:[%s4] sm:$0xff] %vm261, %v260
    // Predicated region
    $region22: #{tpu_custom_call.1} parent=1 // pred_check
      _
    $region23: #{tpu_custom_call.1} parent=1 // pred_check_branch
      %264 = sbr.rel (0) target = $region25
    $region24: #{tpu_custom_call.1} parent=1 // pred_region
      _
    $region25: #{tpu_custom_call.1} parent=1 // pred_fallthru
      _
    // Predicated region
    $region26: #{tpu_custom_call.1} parent=1 // pred_check
      _
    $region27: #{tpu_custom_call.1} parent=1 // pred_check_branch
      %266 = sbr.rel (0) target = $region29
    $region28: #{tpu_custom_call.1} parent=1 // pred_region
      _
    $region29: #{tpu_custom_call.1} parent=1 // pred_fallthru
      _
    %267 = vsyncpa [#allocation3], 1

</llo_original>
